<compile_context>
chip_gen: v5e
topology: v5e:2x2
jax: 0.10.0
libtpu: 0.0.40
codegen_flags: <defaults>
</compile_context>

<pallas_src>
import jax
import jax.numpy as jnp
from jax import lax
from jax.experimental import pallas as pl
from jax.experimental.pallas import tpu as pltpu


def common_block_kernel(x_ref, w1_ref, w2_ref, b_ref, o_ref):
    """One grid step = one sequence: x_ref / o_ref are (C, L)."""
    C, L = x_ref.shape
    cdt = w1_ref.dtype

    xf = x_ref[...]                          # (C, L) input dtype (residual source)
    x = xf.astype(cdt)                       # cast once before building taps

    # Boundary masks: a single (1, L) row, reused by both convs.  No modulo:
    # each block is exactly one sequence.
    col = lax.broadcasted_iota(jnp.int32, (1, L), 1)
    first = col == 0
    last = col == L - 1

    def taps(h):
        # h[:, l-1] (zero at l == 0) and h[:, l+1] (zero at l == L-1).
        hp = jnp.where(first, 0, pltpu.roll(h, shift=1, axis=1))
        hn = jnp.where(last, 0, pltpu.roll(h, shift=L - 1, axis=1))
        return hp, hn

    def conv_bn(w_ref, h, hp, hn, bias):
        # 3 accumulating MXU dots (k = 0, 1, 2), f32 accumulation; BN scale is
        # already folded into w, bias is the folded BN shift with shape (C, 1).
        acc = jnp.dot(w_ref[0], hp, preferred_element_type=jnp.float32)
        acc = acc + jnp.dot(w_ref[1], h, preferred_element_type=jnp.float32)
        acc = acc + jnp.dot(w_ref[2], hn, preferred_element_type=jnp.float32)
        return acc + bias

    b = b_ref[...]                           # (C, 2) f32
    b1 = b[:, 0:1]
    b2 = b[:, 1:2]

    # conv1 + bn1 + relu
    xp, xn = taps(x)
    h = jnp.maximum(conv_bn(w1_ref, x, xp, xn, b1), 0.0)    # f32
    # conv2 + bn2 + residual + relu
    hc = h.astype(cdt)                                       # cast once
    hp, hn = taps(hc)
    y = conv_bn(w2_ref, hc, hp, hn, b2)
    o_ref[...] = jnp.maximum(y + xf.astype(jnp.float32), 0.0).astype(o_ref.dtype)


def common_block(x, w1, g1, be1, m1, v1, w2, g2, be2, m2, v2, *,
                 eps=1e-5, compute_dtype=jnp.bfloat16):
    """Forward pass of CommonBlock (stride=1, in_channel == out_channel).

    x: (N, C, L); w1/w2: (C, C, 3) PyTorch Conv1d weights (no bias);
    g/be/m/v: BatchNorm1d weight/bias/running_mean/running_var, shape (C,)."""
    N, C, L = x.shape
    assert w1.shape == (C, C, 3) and w2.shape == (C, C, 3), \
        "residual block requires in_channel == out_channel and stride == 1"

    f32 = jnp.float32
    # Fold BN (inference mode) into per-output-channel scale/shift.
    s1 = (g1 / jnp.sqrt(v1 + eps)).astype(f32)
    b1 = (be1 - m1 * s1).astype(f32)
    s2 = (g2 / jnp.sqrt(v2 + eps)).astype(f32)
    b2 = (be2 - m2 * s2).astype(f32)

    def fold(w, s):
        # (Cout, Cin, K=3) -> (K, Cout, Cin), BN scale folded per output channel.
        wk = jnp.transpose(w.astype(f32), (2, 0, 1))
        return (wk * s[None, :, None]).astype(compute_dtype)

    w1f = fold(w1, s1)                                   # (3, C, C)
    w2f = fold(w2, s2)                                   # (3, C, C)
    bias = jnp.stack([b1, b2], axis=1)                   # (C, 2)

    out_dtype = x.dtype
    # VMEM accounting: in/out blocks double-buffered + ~12 block-sized f32
    # intermediates (taps, conv accumulators, casts) + weights + headroom.
    blk_f32 = C * L * 4
    est = (2 * C * L * x.dtype.itemsize
           + 2 * C * L * jnp.dtype(out_dtype).itemsize
           + 12 * blk_f32
           + 2 * (3 * C * C) * jnp.dtype(compute_dtype).itemsize
           + C * 2 * 4
           + (1 << 20))
    vmem_limit = int(min(max(est, 8 << 20), 48 << 20))

    out = pl.pallas_call(
        common_block_kernel,
        out_shape=jax.ShapeDtypeStruct((N, C, L), out_dtype),
        grid=(N,),
        in_specs=[
            pl.BlockSpec((None, C, L), lambda i: (i, 0, 0)),   # one sequence/step
            pl.BlockSpec((3, C, C), lambda i: (0, 0, 0)),      # fused conv1 weight
            pl.BlockSpec((3, C, C), lambda i: (0, 0, 0)),      # fused conv2 weight
            pl.BlockSpec((C, 2), lambda i: (0, 0)),            # bn biases
        ],
        out_specs=pl.BlockSpec((None, C, L), lambda i: (i, 0, 0)),
        compiler_params=pltpu.CompilerParams(
            dimension_semantics=("parallel",),   # batch axis: both v7x TCs
            vmem_limit_bytes=vmem_limit),
    )(x, w1f, w2f, bias)
    return out


# ---------------- pure-JAX reference (matches PyTorch eval-mode forward) ----
def reference(x, w1, g1, be1, m1, v1, w2, g2, be2, m2, v2, eps=1e-5):
    def conv(z, w):
        return lax.conv_general_dilated(
            z, w, window_strides=(1,), padding=[(1, 1)],
            dimension_numbers=("NCH", "OIH", "NCH"))

    def bn(z, g, b, m, v):
        return ((z - m[None, :, None]) / jnp.sqrt(v[None, :, None] + eps)
                * g[None, :, None] + b[None, :, None])

    h = jax.nn.relu(bn(conv(x, w1), g1, be1, m1, v1))
    y = bn(conv(h, w2), g2, be2, m2, v2)
    return jax.nn.relu(y + x)


if __name__ == "__main__":
    N, C, L = 2, 8, 128          # batch, channels (in == out), sequence length
    eps = 1e-5

    key = jax.random.PRNGKey(0)
    ks = jax.random.split(key, 11)

    x = jax.random.normal(ks[0], (N, C, L), dtype=jnp.float32)

    # Conv weights in PyTorch layout (Cout, Cin, K=3), no bias.
    w1 = jax.random.normal(ks[1], (C, C, 3), dtype=jnp.float32) * 0.2
    w2 = jax.random.normal(ks[2], (C, C, 3), dtype=jnp.float32) * 0.2

    # BatchNorm1d params + running stats (deterministic, synthetic).
    g1 = 1.0 + 0.1 * jax.random.normal(ks[3], (C,), dtype=jnp.float32)
    be1 = 0.1 * jax.random.normal(ks[4], (C,), dtype=jnp.float32)
    m1 = 0.1 * jax.random.normal(ks[5], (C,), dtype=jnp.float32)
    v1 = jax.random.uniform(ks[6], (C,), minval=0.5, maxval=1.5, dtype=jnp.float32)
    g2 = 1.0 + 0.1 * jax.random.normal(ks[7], (C,), dtype=jnp.float32)
    be2 = 0.1 * jax.random.normal(ks[8], (C,), dtype=jnp.float32)
    m2 = 0.1 * jax.random.normal(ks[9], (C,), dtype=jnp.float32)
    v2 = jax.random.uniform(ks[10], (C,), minval=0.5, maxval=1.5, dtype=jnp.float32)

    ref = jax.block_until_ready(
        reference(x, w1, g1, be1, m1, v1, w2, g2, be2, m2, v2, eps))

    # f32 MXU path: tight check against the reference.
    out_f32 = jax.block_until_ready(
        common_block(x, w1, g1, be1, m1, v1, w2, g2, be2, m2, v2,
                     eps=eps, compute_dtype=jnp.float32))
    assert out_f32.shape == (N, C, L)
    assert jnp.allclose(out_f32, ref, atol=5e-4, rtol=5e-4), \
        f"f32 path max abs err = {jnp.max(jnp.abs(out_f32 - ref))}"

    # bf16 MXU-operand path (default, fast on v6e/v7x); f32 accumulation keeps
    # the error small but the tolerance is loosened accordingly.
    out_bf16 = jax.block_until_ready(
        common_block(x, w1, g1, be1, m1, v1, w2, g2, be2, m2, v2, eps=eps))
    assert out_bf16.shape == (N, C, L)
    assert jnp.allclose(out_bf16, ref, atol=5e-2, rtol=5e-2), \
        f"bf16 path max abs err = {jnp.max(jnp.abs(out_bf16 - ref))}"

    print("KERNEL_OK")
</pallas_src>

<mosaic_0001>
module attributes {stable_mosaic.version = 11 : i64} {
  func.func @common_block_kernel(%arg0: i32, %arg1: memref<1x8x128xf32, #tpu.memory_space<vmem>>, %arg2: memref<3x8x8xf32, #tpu.memory_space<vmem>>, %arg3: memref<3x8x8xf32, #tpu.memory_space<vmem>>, %arg4: memref<8x2xf32, #tpu.memory_space<vmem>>, %arg5: memref<1x8x128xf32, #tpu.memory_space<vmem>>) attributes {dimension_semantics = [#tpu.dimension_semantics<parallel>], iteration_bounds = array<i64: 2>, scalar_prefetch = 0 : i64, scratch_operands = 0 : i64, tpu.core_type = #tpu.core_type<tc>, window_params = [{transform_indices = @transform_0, window_bounds = array<i64: 1, 8, 128>}, {pipeline_mode = #tpu.pipeline_mode<synchronous>, transform_indices = @transform_1, window_bounds = array<i64: 3, 8, 8>}, {pipeline_mode = #tpu.pipeline_mode<synchronous>, transform_indices = @transform_2, window_bounds = array<i64: 3, 8, 8>}, {pipeline_mode = #tpu.pipeline_mode<synchronous>, transform_indices = @transform_3, window_bounds = array<i64: 8, 2>}, {transform_indices = @transform_4, window_bounds = array<i64: 1, 8, 128>}]} {
    %c0 = arith.constant 0 : index
    %c0_0 = arith.constant 0 : index
    %c0_1 = arith.constant 0 : index
    %0 = vector.load %arg1[%c0, %c0_0, %c0_1] : memref<1x8x128xf32, #tpu.memory_space<vmem>>, vector<1x8x128xf32>
    %1 = vector.shape_cast %0 : vector<1x8x128xf32> to vector<8x128xf32>
    %2 = tpu.iota {dimensions = array<i32: 1>} : vector<1x128xi32>
    %c0_i32 = arith.constant 0 : i32
    %3 = vector.broadcast %c0_i32 : i32 to vector<1x128xi32>
    %4 = arith.cmpi eq, %2, %3 : vector<1x128xi32>
    %c127_i32 = arith.constant 127 : i32
    %5 = vector.broadcast %c127_i32 : i32 to vector<1x128xi32>
    %6 = arith.cmpi eq, %2, %5 : vector<1x128xi32>
    %c0_2 = arith.constant 0 : index
    %c0_3 = arith.constant 0 : index
    %7 = vector.load %arg4[%c0_2, %c0_3] : memref<8x2xf32, #tpu.memory_space<vmem>>, vector<8x2xf32>
    %8 = vector.extract_strided_slice %7 {offsets = [0, 0], sizes = [8, 1], strides = [1, 1]} : vector<8x2xf32> to vector<8x1xf32>
    %9 = vector.extract_strided_slice %7 {offsets = [0, 1], sizes = [8, 1], strides = [1, 1]} : vector<8x2xf32> to vector<8x1xf32>
    %c1_i32 = arith.constant 1 : i32
    %10 = tpu.dynamic_rotate %1 by %c1_i32 dim 1 : vector<8x128xf32>, i32 -> vector<8x128xf32>
    %c0_i32_4 = arith.constant 0 : i32
    %11 = arith.sitofp %c0_i32_4 : i32 to f32
    %12 = vector.shape_cast %4 : vector<1x128xi1> to vector<1x128xi1>
    %13 = vector.broadcast %12 : vector<1x128xi1> to vector<8x128xi1>
    %14 = vector.broadcast %11 : f32 to vector<8x128xf32>
    %15 = arith.select %13, %14, %10 : vector<8x128xi1>, vector<8x128xf32>
    %c127_i32_5 = arith.constant 127 : i32
    %16 = tpu.dynamic_rotate %1 by %c127_i32_5 dim 1 : vector<8x128xf32>, i32 -> vector<8x128xf32>
    %c0_i32_6 = arith.constant 0 : i32
    %17 = arith.sitofp %c0_i32_6 : i32 to f32
    %18 = vector.shape_cast %6 : vector<1x128xi1> to vector<1x128xi1>
    %19 = vector.broadcast %18 : vector<1x128xi1> to vector<8x128xi1>
    %20 = vector.broadcast %17 : f32 to vector<8x128xf32>
    %21 = arith.select %19, %20, %16 : vector<8x128xi1>, vector<8x128xf32>
    %c0_7 = arith.constant 0 : index
    %c0_8 = arith.constant 0 : index
    %c0_9 = arith.constant 0 : index
    %22 = vector.load %arg2[%c0_7, %c0_8, %c0_9] : memref<3x8x8xf32, #tpu.memory_space<vmem>>, vector<1x8x8xf32>
    %23 = vector.shape_cast %22 : vector<1x8x8xf32> to vector<8x8xf32>
    %cst = arith.constant dense<0.000000e+00> : vector<8x128xf32>
    %24 = tpu.matmul %23, %15, %cst {dimension_numbers = #tpu.dot_dimension_numbers<[1], [0], [0], [1], [0, 0, 1, 1], [], []>} : vector<8x8xf32>, vector<8x128xf32>, vector<8x128xf32> -> vector<8x128xf32>
    %c1 = arith.constant 1 : index
    %c0_10 = arith.constant 0 : index
    %c0_11 = arith.constant 0 : index
    %25 = vector.load %arg2[%c1, %c0_10, %c0_11] : memref<3x8x8xf32, #tpu.memory_space<vmem>>, vector<1x8x8xf32>
    %26 = vector.shape_cast %25 : vector<1x8x8xf32> to vector<8x8xf32>
    %cst_12 = arith.constant dense<0.000000e+00> : vector<8x128xf32>
    %27 = tpu.matmul %26, %1, %cst_12 {dimension_numbers = #tpu.dot_dimension_numbers<[1], [0], [0], [1], [0, 0, 1, 1], [], []>} : vector<8x8xf32>, vector<8x128xf32>, vector<8x128xf32> -> vector<8x128xf32>
    %28 = arith.addf %24, %27 : vector<8x128xf32>
    %c2 = arith.constant 2 : index
    %c0_13 = arith.constant 0 : index
    %c0_14 = arith.constant 0 : index
    %29 = vector.load %arg2[%c2, %c0_13, %c0_14] : memref<3x8x8xf32, #tpu.memory_space<vmem>>, vector<1x8x8xf32>
    %30 = vector.shape_cast %29 : vector<1x8x8xf32> to vector<8x8xf32>
    %cst_15 = arith.constant dense<0.000000e+00> : vector<8x128xf32>
    %31 = tpu.matmul %30, %21, %cst_15 {dimension_numbers = #tpu.dot_dimension_numbers<[1], [0], [0], [1], [0, 0, 1, 1], [], []>} : vector<8x8xf32>, vector<8x128xf32>, vector<8x128xf32> -> vector<8x128xf32>
    %32 = arith.addf %28, %31 : vector<8x128xf32>
    %33 = vector.broadcast %8 : vector<8x1xf32> to vector<8x128xf32>
    %34 = arith.addf %32, %33 : vector<8x128xf32>
    %cst_16 = arith.constant 0.000000e+00 : f32
    %35 = vector.broadcast %cst_16 : f32 to vector<8x128xf32>
    %36 = arith.maximumf %34, %35 : vector<8x128xf32>
    %c1_i32_17 = arith.constant 1 : i32
    %37 = tpu.dynamic_rotate %36 by %c1_i32_17 dim 1 : vector<8x128xf32>, i32 -> vector<8x128xf32>
    %c0_i32_18 = arith.constant 0 : i32
    %38 = arith.sitofp %c0_i32_18 : i32 to f32
    %39 = vector.shape_cast %4 : vector<1x128xi1> to vector<1x128xi1>
    %40 = vector.broadcast %39 : vector<1x128xi1> to vector<8x128xi1>
    %41 = vector.broadcast %38 : f32 to vector<8x128xf32>
    %42 = arith.select %40, %41, %37 : vector<8x128xi1>, vector<8x128xf32>
    %c127_i32_19 = arith.constant 127 : i32
    %43 = tpu.dynamic_rotate %36 by %c127_i32_19 dim 1 : vector<8x128xf32>, i32 -> vector<8x128xf32>
    %c0_i32_20 = arith.constant 0 : i32
    %44 = arith.sitofp %c0_i32_20 : i32 to f32
    %45 = vector.shape_cast %6 : vector<1x128xi1> to vector<1x128xi1>
    %46 = vector.broadcast %45 : vector<1x128xi1> to vector<8x128xi1>
    %47 = vector.broadcast %44 : f32 to vector<8x128xf32>
    %48 = arith.select %46, %47, %43 : vector<8x128xi1>, vector<8x128xf32>
    %c0_21 = arith.constant 0 : index
    %c0_22 = arith.constant 0 : index
    %c0_23 = arith.constant 0 : index
    %49 = vector.load %arg3[%c0_21, %c0_22, %c0_23] : memref<3x8x8xf32, #tpu.memory_space<vmem>>, vector<1x8x8xf32>
    %50 = vector.shape_cast %49 : vector<1x8x8xf32> to vector<8x8xf32>
    %cst_24 = arith.constant dense<0.000000e+00> : vector<8x128xf32>
    %51 = tpu.matmul %50, %42, %cst_24 {dimension_numbers = #tpu.dot_dimension_numbers<[1], [0], [0], [1], [0, 0, 1, 1], [], []>} : vector<8x8xf32>, vector<8x128xf32>, vector<8x128xf32> -> vector<8x128xf32>
    %c1_25 = arith.constant 1 : index
    %c0_26 = arith.constant 0 : index
    %c0_27 = arith.constant 0 : index
    %52 = vector.load %arg3[%c1_25, %c0_26, %c0_27] : memref<3x8x8xf32, #tpu.memory_space<vmem>>, vector<1x8x8xf32>
    %53 = vector.shape_cast %52 : vector<1x8x8xf32> to vector<8x8xf32>
    %cst_28 = arith.constant dense<0.000000e+00> : vector<8x128xf32>
    %54 = tpu.matmul %53, %36, %cst_28 {dimension_numbers = #tpu.dot_dimension_numbers<[1], [0], [0], [1], [0, 0, 1, 1], [], []>} : vector<8x8xf32>, vector<8x128xf32>, vector<8x128xf32> -> vector<8x128xf32>
    %55 = arith.addf %51, %54 : vector<8x128xf32>
    %c2_29 = arith.constant 2 : index
    %c0_30 = arith.constant 0 : index
    %c0_31 = arith.constant 0 : index
    %56 = vector.load %arg3[%c2_29, %c0_30, %c0_31] : memref<3x8x8xf32, #tpu.memory_space<vmem>>, vector<1x8x8xf32>
    %57 = vector.shape_cast %56 : vector<1x8x8xf32> to vector<8x8xf32>
    %cst_32 = arith.constant dense<0.000000e+00> : vector<8x128xf32>
    %58 = tpu.matmul %57, %48, %cst_32 {dimension_numbers = #tpu.dot_dimension_numbers<[1], [0], [0], [1], [0, 0, 1, 1], [], []>} : vector<8x8xf32>, vector<8x128xf32>, vector<8x128xf32> -> vector<8x128xf32>
    %59 = arith.addf %55, %58 : vector<8x128xf32>
    %60 = vector.broadcast %9 : vector<8x1xf32> to vector<8x128xf32>
    %61 = arith.addf %59, %60 : vector<8x128xf32>
    %62 = arith.addf %61, %1 : vector<8x128xf32>
    %cst_33 = arith.constant 0.000000e+00 : f32
    %63 = vector.broadcast %cst_33 : f32 to vector<8x128xf32>
    %64 = arith.maximumf %62, %63 : vector<8x128xf32>
    %c0_34 = arith.constant 0 : index
    %c0_35 = arith.constant 0 : index
    %c0_36 = arith.constant 0 : index
    %65 = vector.load %arg5[%c0_34, %c0_35, %c0_36] : memref<1x8x128xf32, #tpu.memory_space<vmem>>, vector<1x8x128xf32>
    %66 = vector.shape_cast %65 : vector<1x8x128xf32> to vector<8x128xf32>
    %67 = vector.shape_cast %64 : vector<8x128xf32> to vector<1x8x128xf32>
    tpu.vector_store %arg5[%c0_34, %c0_35, %c0_36], %67 {strides = array<i32>} : memref<1x8x128xf32, #tpu.memory_space<vmem>>, vector<1x8x128xf32>,
    return
  }
  func.func @transform_0(%arg0: i32) -> (i32, i32, i32) {
    %c0_i32 = arith.constant 0 : i32
    %c0_i32_0 = arith.constant 0 : i32
    %c0_i32_1 = arith.constant 0 : i32
    return %arg0, %c0_i32, %c0_i32_0 : i32, i32, i32
  }
  func.func @transform_1(%arg0: i32) -> (i32, i32, i32) {
    %c0_i32 = arith.constant 0 : i32
    %c0_i32_0 = arith.constant 0 : i32
    %c0_i32_1 = arith.constant 0 : i32
    %c0_i32_2 = arith.constant 0 : i32
    return %c0_i32, %c0_i32_0, %c0_i32_1 : i32, i32, i32
  }
  func.func @transform_2(%arg0: i32) -> (i32, i32, i32) {
    %c0_i32 = arith.constant 0 : i32
    %c0_i32_0 = arith.constant 0 : i32
    %c0_i32_1 = arith.constant 0 : i32
    %c0_i32_2 = arith.constant 0 : i32
    return %c0_i32, %c0_i32_0, %c0_i32_1 : i32, i32, i32
  }
  func.func @transform_3(%arg0: i32) -> (i32, i32) {
    %c0_i32 = arith.constant 0 : i32
    %c0_i32_0 = arith.constant 0 : i32
    %c0_i32_1 = arith.constant 0 : i32
    return %c0_i32, %c0_i32_0 : i32, i32
  }
  func.func @transform_4(%arg0: i32) -> (i32, i32, i32) {
    %c0_i32 = arith.constant 0 : i32
    %c0_i32_0 = arith.constant 0 : i32
    %c0_i32_1 = arith.constant 0 : i32
    return %arg0, %c0_i32, %c0_i32_0 : i32, i32, i32
  }
}

</mosaic_0001>

<llo_original>
// kernel: tpu_custom_call.1
$region0: #{tpu_custom_call.1}
  #allocation0 [shape = 'u32[]', space=smem, size = 0x4, offset = 0x4, fixed_abs, tag = 'smem constant byte address 0x4 - core index']
  #allocation1 [shape = 'u32[72,128]{1,0:T(1,128)}', space=vmem, size = 0x9000, scoped, tag = 'internal scratch']
  %s0 = inlined_call_operand.hbm [shape: f32[2,8,128], index: 0, kind: input, shape index: {}]
  %s1 = inlined_call_operand.hbm [shape: f32[3,8,8], index: 1, kind: input, shape index: {}]
  %s2 = inlined_call_operand.hbm [shape: f32[3,8,8], index: 2, kind: input, shape index: {}]
  %s3 = inlined_call_operand.vmem [shape: f32[8,2], index: 3, kind: input, shape index: {}]
  %s4 = inlined_call_operand.hbm [shape: f32[2,8,128], index: 4, kind: output, shape index: {}]
  %s5 = sld [smem:[#allocation0]]
  $region61: #{tpu_custom_call.1} parent=0
    _
  %s7 = ssub.s32 1, %s5
  %s8 = scalar_select 0, %s7, %s5
  $region1: #{tpu_custom_call.1} parent=0
    #allocation2 [shape = 'u8[8192]{0}', space=vmem, size = 0x2000, scoped, tag = 'input window, operand 0']
    #allocation3 [shape = 's32[2]{0}', space=sflag, size = 0x8, scoped, tag = 'scoped memory for tpu_custom_call.1']
    #allocation4 [shape = 's32[2]{0}', space=sflag, size = 0x8, scoped, tag = 'scoped memory for tpu_custom_call.1']
    #allocation5 [shape = 'u8[12288]{0}', space=vmem, size = 0x3000, scoped, tag = 'input window, operand 1, single buffered']
    #allocation6 [shape = 's32[1]{0}', space=sflag, size = 0x4, scoped, tag = 'scoped memory for tpu_custom_call.1']
    #allocation7 [shape = 'u8[12288]{0}', space=vmem, size = 0x3000, scoped, tag = 'input window, operand 2, single buffered']
    #allocation8 [shape = 'u8[8192]{0}', space=vmem, size = 0x2000, scoped, tag = 'output window, operand 0']
    %9 = vsyncpa [#allocation3], 0
    %s10 = scalar_lea.sflag [#allocation3], 1
    %11 = vsyncpa %s10, 0
    %12 = vsyncpa [#allocation6], 0
    %13 = vsyncpa [#allocation4], 0
    %s14 = scalar_lea.sflag [#allocation4], 1
    %15 = vsyncpa %s14, 0
    loop: start=0, step=1, limit=4
    $region2: #{tpu_custom_call.1} parent=1 // loop_pre_header
      _
    $region3: #{tpu_custom_call.1} parent=1 // loop_header
      %s17 = sphi 0, %s21
      %p18 = scmp.ge.s32.totalorder %s17, 4
      %s27 = sphi 0, %s29
      %s30 = sphi 0, %s27
      %s31 = sphi 0, %s30
      %s47 = sphi 0, %s31
      %s51 = sphi 0, %s51
      %s53 = sphi 0, %s51
      %s54 = sphi 0, %s53
      %s68 = sphi 0, %s54
      %s72 = sphi 0, %s72
      %s74 = sphi 0, %s72
      %s75 = sphi 0, %s74
      %s89 = sphi 0, %s75
      %s93 = sphi 0, %s93
      %s95 = sphi 0, %s93
      %s96 = sphi 0, %s95
      %s110 = sphi 0, %s96
      %s116 = sphi 0, %s118
      %s119 = sphi 0, %s116
      %s120 = sphi 0, %s119
      %s136 = sphi 0, %s120
    $region4: #{tpu_custom_call.1} parent=1 // loop_header_branch
      %20 = sbr.rel (%p18) target = $region8
    $region5: #{tpu_custom_call.1} parent=1 // loop_body
      %s22 = ssub.s32 %s17, 1
      %s23 = ssub.s32 %s17, 2
      %s24 = sadd.s32 %s17, 1
      %s25 = ssub.s32 %s17, %s24
      %p26 = scmp.eq.s32.totalorder %s25, 0
      %s28 = sadd.s32 %s27, 1
      %s29 = scalar_select %p26, %s27, %s28
      %p32 = pneg %p26
      %p33 = scmp.eq.s32.totalorder %s17, 1
      %p34 = por %p32, %p33
      %p35 = scmp.ne.s32.totalorder %s27, %s30
      %p36 = scmp.eq.s32.totalorder %s17, 0
      %p37 = por %p35, %p36
      %p38 = scmp.ne.s32.totalorder %s27, %s30
      %p39 = scmp.eq.s32.totalorder %s22, 1
      %p40 = por %p38, %p39
      %p41 = scmp.ne.s32.totalorder %s30, %s31
      %p42 = scmp.eq.s32.totalorder %s22, 0
      %p43 = por %p41, %p42
      %p44 = scmp.ne.s32.totalorder %s30, %s31
      %p45 = scmp.eq.s32.totalorder %s23, 1
      %p46 = por %p44, %p45
      %p48 = scmp.ne.s32.totalorder %s31, %s47
      %p49 = scmp.eq.s32.totalorder %s23, 0
      %p50 = por %p48, %p49
      %s52 = sadd.s32 %s51, 1
      %p55 = scmp.eq.s32.totalorder %s17, 1
      %p56 = scmp.ne.s32.totalorder %s51, %s53
      %p57 = scmp.eq.s32.totalorder %s17, 0
      %p58 = por %p56, %p57
      %p59 = scmp.ne.s32.totalorder %s51, %s53
      %p60 = scmp.eq.s32.totalorder %s22, 1
      %p61 = por %p59, %p60
      %p62 = scmp.ne.s32.totalorder %s53, %s54
      %p63 = scmp.eq.s32.totalorder %s22, 0
      %p64 = por %p62, %p63
      %p65 = scmp.ne.s32.totalorder %s53, %s54
      %p66 = scmp.eq.s32.totalorder %s23, 1
      %p67 = por %p65, %p66
      %p69 = scmp.ne.s32.totalorder %s54, %s68
      %p70 = scmp.eq.s32.totalorder %s23, 0
      %p71 = por %p69, %p70
      %s73 = sadd.s32 %s72, 1
      %p76 = scmp.eq.s32.totalorder %s17, 1
      %p77 = scmp.ne.s32.totalorder %s72, %s74
      %p78 = scmp.eq.s32.totalorder %s17, 0
      %p79 = por %p77, %p78
      %p80 = scmp.ne.s32.totalorder %s72, %s74
      %p81 = scmp.eq.s32.totalorder %s22, 1
      %p82 = por %p80, %p81
      %p83 = scmp.ne.s32.totalorder %s74, %s75
      %p84 = scmp.eq.s32.totalorder %s22, 0
      %p85 = por %p83, %p84
      %p86 = scmp.ne.s32.totalorder %s74, %s75
      %p87 = scmp.eq.s32.totalorder %s23, 1
      %p88 = por %p86, %p87
      %p90 = scmp.ne.s32.totalorder %s75, %s89
      %p91 = scmp.eq.s32.totalorder %s23, 0
      %p92 = por %p90, %p91
      %s94 = sadd.s32 %s93, 1
      %p97 = scmp.eq.s32.totalorder %s17, 1
      %p98 = scmp.ne.s32.totalorder %s93, %s95
      %p99 = scmp.eq.s32.totalorder %s17, 0
      %p100 = por %p98, %p99
      %p101 = scmp.ne.s32.totalorder %s93, %s95
      %p102 = scmp.eq.s32.totalorder %s22, 1
      %p103 = por %p101, %p102
      %p104 = scmp.ne.s32.totalorder %s95, %s96
      %p105 = scmp.eq.s32.totalorder %s22, 0
      %p106 = por %p104, %p105
      %p107 = scmp.ne.s32.totalorder %s95, %s96
      %p108 = scmp.eq.s32.totalorder %s23, 1
      %p109 = por %p107, %p108
      %p111 = scmp.ne.s32.totalorder %s96, %s110
      %p112 = scmp.eq.s32.totalorder %s23, 0
      %p113 = por %p111, %p112
      %s114 = ssub.s32 %s17, %s24
      %p115 = scmp.eq.s32.totalorder %s114, 0
      %s117 = sadd.s32 %s116, 1
      %s118 = scalar_select %p115, %s116, %s117
      %p121 = pneg %p115
      %p122 = scmp.eq.s32.totalorder %s17, 1
      %p123 = por %p121, %p122
      %p124 = scmp.ne.s32.totalorder %s116, %s119
      %p125 = scmp.eq.s32.totalorder %s17, 0
      %p126 = por %p124, %p125
      %p127 = scmp.ne.s32.totalorder %s116, %s119
      %p128 = scmp.eq.s32.totalorder %s22, 1
      %p129 = por %p127, %p128
      %p130 = scmp.ne.s32.totalorder %s119, %s120
      %p131 = scmp.eq.s32.totalorder %s22, 0
      %p132 = por %p130, %p131
      %p133 = scmp.ne.s32.totalorder %s119, %s120
      %p134 = scmp.eq.s32.totalorder %s23, 1
      %p135 = por %p133, %p134
      %p137 = scmp.ne.s32.totalorder %s120, %s136
      %p138 = scmp.eq.s32.totalorder %s23, 0
      %p139 = por %p137, %p138
      %p140 = scmp.le.s32.totalorder 1, %s17
      %p141 = scmp.lt.s32.totalorder %s17, 3
      %p142 = pnand %p140, %p141
      %p143 = pneg %p142
      // Predicated region
      $region9: #{tpu_custom_call.1} parent=5 // pred_check
        _
      $region10: #{tpu_custom_call.1} parent=5 // pred_check_branch
        %145 = sbr.rel (%p142) target = $region12
      $region11: #{tpu_custom_call.1} parent=5 // pred_region
        %s146 = ssub.s32 %s17, 1
        // Predicated region
        $region13: #{tpu_custom_call.1} parent=11 // pred_check
          %p147 = pneg %p64
        $region14: #{tpu_custom_call.1} parent=11 // pred_check_branch
          %149 = sbr.rel (%p147) target = $region16
        $region15: #{tpu_custom_call.1} parent=11 // pred_region
          %151 = vsyncadd [#allocation6], 0
          %s152 = sshll.u32 %s1, 4
          %s153 = int_to_ptr.hbm [resolvable:$true] %s152
          %s154 = sshll.u32 [#allocation5], 4
          %s155 = int_to_ptr.vmem [resolvable:$true] %s154
          %160 = dma.hbm_to_vmem [thread:$0]  %s153, 384, %s155, [#allocation6], 128, 128, 8
        $region16: #{tpu_custom_call.1} parent=11 // pred_fallthru
          _
        // Predicated region
        $region17: #{tpu_custom_call.1} parent=11 // pred_check
          %p161 = pneg %p85
        $region18: #{tpu_custom_call.1} parent=11 // pred_check_branch
          %163 = sbr.rel (%p161) target = $region20
        $region19: #{tpu_custom_call.1} parent=11 // pred_region
          %165 = vsyncadd [#allocation6], 0
          %s166 = sshll.u32 %s2, 4
          %s167 = int_to_ptr.hbm [resolvable:$true] %s166
          %s168 = sshll.u32 [#allocation7], 4
          %s169 = int_to_ptr.vmem [resolvable:$true] %s168
          %174 = dma.hbm_to_vmem [thread:$0]  %s167, 384, %s169, [#allocation6], 128, 128, 8
        $region20: #{tpu_custom_call.1} parent=11 // pred_fallthru
          _
        // Predicated region
        $region21: #{tpu_custom_call.1} parent=11 // pred_check
          %p175 = pneg %p106
        $region22: #{tpu_custom_call.1} parent=11 // pred_check_branch
          %177 = sbr.rel (%p175) target = $region24
        $region23: #{tpu_custom_call.1} parent=11 // pred_region
          _
        $region24: #{tpu_custom_call.1} parent=11 // pred_fallthru
          _
      $region12: #{tpu_custom_call.1} parent=5 // pred_fallthru
        _
      %p178 = scmp.lt.s32.totalorder %s17, 2
      // Predicated region
      $region25: #{tpu_custom_call.1} parent=5 // pred_check
        %p179 = pneg %p178
      $region26: #{tpu_custom_call.1} parent=5 // pred_check_branch
        %181 = sbr.rel (%p179) target = $region28
      $region27: #{tpu_custom_call.1} parent=5 // pred_region
        // Predicated region
        $region29: #{tpu_custom_call.1} parent=27 // pred_check
          %p182 = pneg %p37
        $region30: #{tpu_custom_call.1} parent=27 // pred_check_branch
          %184 = sbr.rel (%p182) target = $region32
        $region31: #{tpu_custom_call.1} parent=27 // pred_region
          %s185 = sand.u32 %s27, 1
          %s186 = scalar_lea.sflag [#allocation3], %s185
          %s187 = sand.u32 %s27, 1
          %s188 = smul.addr %s187, 8
          %s189 = scalar_lea.vmem [#allocation2], %s188
          %191 = vsyncadd %s186, 0
          %s192 = smul.addr %s17, 8
          %s193 = scalar_lea.hbm %s0, %s192
          %s195 = sshll.u32 %s193, 4
          %s196 = int_to_ptr.hbm [resolvable:$true] %s195
          %s197 = sshll.u32 %s189, 4
          %s198 = int_to_ptr.vmem [resolvable:$true] %s197
          %200 = dma.hbm_to_vmem [thread:$0]  %s196, 128, %s198, %s186
        $region32: #{tpu_custom_call.1} parent=27 // pred_fallthru
          _
      $region28: #{tpu_custom_call.1} parent=5 // pred_fallthru
        _
      %p201 = scmp.le.s32.totalorder 1, %s17
      %p202 = scmp.lt.s32.totalorder %s17, 3
      %p203 = pnand %p201, %p202
      %p204 = pneg %p203
      // Predicated region
      $region33: #{tpu_custom_call.1} parent=5 // pred_check
        _
      $region34: #{tpu_custom_call.1} parent=5 // pred_check_branch
        %206 = sbr.rel (%p203) target = $region36
      $region35: #{tpu_custom_call.1} parent=5 // pred_region
        %s207 = ssub.s32 %s17, 1
        %s208 = sand.u32 %s30, 1
        %s209 = scalar_lea.sflag [#allocation3], %s208
        %s210 = sand.u32 %s30, 1
        %s211 = smul.addr %s210, 8
        %s212 = scalar_lea.vmem [#allocation2], %s211
        // Predicated region
        $region37: #{tpu_custom_call.1} parent=35 // pred_check
          %p213 = pneg %p43
        $region38: #{tpu_custom_call.1} parent=35 // pred_check_branch
          %215 = sbr.rel (%p213) target = $region40
        $region39: #{tpu_custom_call.1} parent=35 // pred_region
          %217 = dma.done %s209, 128
        $region40: #{tpu_custom_call.1} parent=35 // pred_fallthru
          _
        // Predicated region
        $region41: #{tpu_custom_call.1} parent=35 // pred_check
          %p218 = pneg %p64
        $region42: #{tpu_custom_call.1} parent=35 // pred_check_branch
          %220 = sbr.rel (%p218) target = $region44
        $region43: #{tpu_custom_call.1} parent=35 // pred_region
          %222 = dma.done [#allocation6], 384
        $region44: #{tpu_custom_call.1} parent=35 // pred_fallthru
          _
        // Predicated region
        $region45: #{tpu_custom_call.1} parent=35 // pred_check
          %p223 = pneg %p85
        $region46: #{tpu_custom_call.1} parent=35 // pred_check_branch
          %225 = sbr.rel (%p223) target = $region48
        $region47: #{tpu_custom_call.1} parent=35 // pred_region
          %227 = dma.done [#allocation6], 384
        $region48: #{tpu_custom_call.1} parent=35 // pred_fallthru
          _
        %s228 = sand.u32 %s30, 1
        %s229 = scalar_lea.sflag [#allocation3], %s228
        %s230 = sand.u32 %s30, 1
        %s231 = smul.addr %s230, 8
        %s232 = scalar_lea.vmem [#allocation2], %s231
        %p233 = pneg %p43
        %p234 = pneg %p40
        %p235 = pneg %p64
        %p236 = pneg %p61
        %p237 = pneg %p85
        %p238 = pneg %p82
        %p239 = pneg %p106
        %p240 = pneg %p103
        %p241 = pneg %p132
        %p242 = pneg %p129
        %s243 = sand.u32 %s119, 1
        %s244 = scalar_lea.sflag [#allocation4], %s243
        %s245 = sand.u32 %s119, 1
        %s246 = smul.addr %s245, 8
        %s247 = scalar_lea.vmem [#allocation8], %s246
        %v248 = vld [vmem:[%s212] sm:$0xff]
        %v249 = vlaneseq
        %v250 = vand.u32 %v249, 127
        %vm251 = vcmp.eq.s32.totalorder %v250, 0
        %vm252 = vcmp.eq.s32.totalorder %v250, 127
        %v253 = vld [vmem:[%s3] sm:$0xff]
        %254 = vrot.lane.b32.xlu0 %v248, 1
        %v255 = vpop.permute.xlu0 %254
        %v256 = vsel %vm251, 1, 0
        %vm257 = vcmp.eq.s32.totalorder %v256, 1
        %v258 = vsel %vm257, 0.0, %v255
        %259 = vrot.lane.b32.xlu0 %v248, 127
        %v260 = vpop.permute.xlu0 %259
        %v261 = vsel %vm252, 1, 0
        %vm262 = vcmp.eq.s32.totalorder %v261, 1
        %v263 = vsel %vm262, 0.0, %v260
        %v264 = vld [vmem:[#allocation5] sm:$0xff]
        %s265 = scalar_lea.vmem [#allocation5], 8
        %v266 = vld [vmem:[%s265] sm:$0xff]
        %vm267 = vcmask 64512
        %v269 = vsel %vm267, %v266, 0
        %271 = vmatpush.msra.mxu0 0.0
        %272 = vmatpush.msra.mxu0 0.0
        %273 = vmatpush.msra.mxu0 0.0
        %274 = vmatpush.msra.mxu0 0.0
        %275 = vmatpush.msra.mxu0 0.0
        %276 = vmatpush.msra.mxu0 0.0
        %277 = vmatpush.msra.mxu0 0.0
        %278 = vmatpush.msra.mxu0 0.0
        %279 = vmatpush.msra.mxu0 0.0
        %280 = vmatpush.msra.mxu0 0.0
        %281 = vmatpush.msra.mxu0 0.0
        %282 = vmatpush.msra.mxu0 0.0
        %283 = vmatpush.msra.mxu0 0.0
        %284 = vmatpush.msra.mxu0 0.0
        %285 = vmatpush.msra.mxu0 0.0
        %286 = vmatpush.msra.mxu0 %v248
        %287 = vmatmul.f32.gmra.mxu0 %v269
        %v288 = vpop.f32.mrf.mxu0
        %v289 = vadd.f32 0.0, %v288
        %290 = vdwg.mxu0
        %v292 = vsel %vm267, %v264, 0
        %294 = vmatpush.msra.mxu0 0.0
        %295 = vmatpush.msra.mxu0 0.0
        %296 = vmatpush.msra.mxu0 0.0
        %297 = vmatpush.msra.mxu0 0.0
        %298 = vmatpush.msra.mxu0 0.0
        %299 = vmatpush.msra.mxu0 0.0
        %300 = vmatpush.msra.mxu0 0.0
        %301 = vmatpush.msra.mxu0 0.0
        %302 = vmatpush.msra.mxu0 0.0
        %303 = vmatpush.msra.mxu0 0.0
        %304 = vmatpush.msra.mxu0 0.0
        %305 = vmatpush.msra.mxu0 0.0
        %306 = vmatpush.msra.mxu0 0.0
        %307 = vmatpush.msra.mxu0 0.0
        %308 = vmatpush.msra.mxu0 0.0
        %309 = vmatpush.msra.mxu0 %v258
        %310 = vmatmul.f32.gmra.mxu0 %v292
        %v311 = vpop.f32.mrf.mxu0
        %v312 = vadd.f32 %v289, %v311
        %313 = vdwg.mxu0
        %s314 = scalar_lea.vmem [#allocation5], 16
        %v315 = vld [vmem:[%s314] sm:$0xff]
        %v317 = vsel %vm267, %v315, 0
        %319 = vmatpush.msra.mxu0 0.0
        %320 = vmatpush.msra.mxu0 0.0
        %321 = vmatpush.msra.mxu0 0.0
        %322 = vmatpush.msra.mxu0 0.0
        %323 = vmatpush.msra.mxu0 0.0
        %324 = vmatpush.msra.mxu0 0.0
        %325 = vmatpush.msra.mxu0 0.0
        %326 = vmatpush.msra.mxu0 0.0
        %327 = vmatpush.msra.mxu0 0.0
        %328 = vmatpush.msra.mxu0 0.0
        %329 = vmatpush.msra.mxu0 0.0
        %330 = vmatpush.msra.mxu0 0.0
        %331 = vmatpush.msra.mxu0 0.0
        %332 = vmatpush.msra.mxu0 0.0
        %333 = vmatpush.msra.mxu0 0.0
        %334 = vmatpush.msra.mxu0 %v263
        %335 = vmatmul.f32.gmra.mxu0 %v317
        %v336 = vpop.f32.mrf.mxu0
        %v337 = vadd.f32 0.0, %v336
        %338 = vdwg.mxu0
        %v339 = vadd.f32 %v312, %v337
        %341 = vset.pattern.permute.xlu0 0
        %342 = vperm.xlu0 %341, %v253
        %v343 = vpop.permute.xlu0 %342
        %v345 = vadd.f32 %v339, %v343
        %v346 = vmax.f32 %v345, 0.0
        %347 = vrot.lane.b32.xlu0 %v346, 1
        %v348 = vpop.permute.xlu0 %347
        %v349 = vsel %vm257, 0.0, %v348
        %350 = vrot.lane.b32.xlu0 %v346, 127
        %v351 = vpop.permute.xlu0 %350
        %v352 = vsel %vm262, 0.0, %v351
        %v353 = vld [vmem:[#allocation7] sm:$0xff]
        %s354 = scalar_lea.vmem [#allocation7], 8
        %v355 = vld [vmem:[%s354] sm:$0xff]
        %v357 = vsel %vm267, %v355, 0
        %359 = vmatpush.msra.mxu0 0.0
        %360 = vmatpush.msra.mxu0 0.0
        %361 = vmatpush.msra.mxu0 0.0
        %362 = vmatpush.msra.mxu0 0.0
        %363 = vmatpush.msra.mxu0 0.0
        %364 = vmatpush.msra.mxu0 0.0
        %365 = vmatpush.msra.mxu0 0.0
        %366 = vmatpush.msra.mxu0 0.0
        %367 = vmatpush.msra.mxu0 0.0
        %368 = vmatpush.msra.mxu0 0.0
        %369 = vmatpush.msra.mxu0 0.0
        %370 = vmatpush.msra.mxu0 0.0
        %371 = vmatpush.msra.mxu0 0.0
        %372 = vmatpush.msra.mxu0 0.0
        %373 = vmatpush.msra.mxu0 0.0
        %374 = vmatpush.msra.mxu0 %v346
        %375 = vmatmul.f32.gmra.mxu0 %v357
        %v376 = vpop.f32.mrf.mxu0
        %v377 = vadd.f32 0.0, %v376
        %378 = vdwg.mxu0
        %v380 = vsel %vm267, %v353, 0
        %382 = vmatpush.msra.mxu0 0.0
        %383 = vmatpush.msra.mxu0 0.0
        %384 = vmatpush.msra.mxu0 0.0
        %385 = vmatpush.msra.mxu0 0.0
        %386 = vmatpush.msra.mxu0 0.0
        %387 = vmatpush.msra.mxu0 0.0
        %388 = vmatpush.msra.mxu0 0.0
        %389 = vmatpush.msra.mxu0 0.0
        %390 = vmatpush.msra.mxu0 0.0
        %391 = vmatpush.msra.mxu0 0.0
        %392 = vmatpush.msra.mxu0 0.0
        %393 = vmatpush.msra.mxu0 0.0
        %394 = vmatpush.msra.mxu0 0.0
        %395 = vmatpush.msra.mxu0 0.0
        %396 = vmatpush.msra.mxu0 0.0
        %397 = vmatpush.msra.mxu0 %v349
        %398 = vmatmul.f32.gmra.mxu0 %v380
        %v399 = vpop.f32.mrf.mxu0
        %v400 = vadd.f32 %v377, %v399
        %401 = vdwg.mxu0
        %s402 = scalar_lea.vmem [#allocation7], 16
        %v403 = vld [vmem:[%s402] sm:$0xff]
        %v405 = vsel %vm267, %v403, 0
        %407 = vmatpush.msra.mxu0 0.0
        %408 = vmatpush.msra.mxu0 0.0
        %409 = vmatpush.msra.mxu0 0.0
        %410 = vmatpush.msra.mxu0 0.0
        %411 = vmatpush.msra.mxu0 0.0
        %412 = vmatpush.msra.mxu0 0.0
        %413 = vmatpush.msra.mxu0 0.0
        %414 = vmatpush.msra.mxu0 0.0
        %415 = vmatpush.msra.mxu0 0.0
        %416 = vmatpush.msra.mxu0 0.0
        %417 = vmatpush.msra.mxu0 0.0
        %418 = vmatpush.msra.mxu0 0.0
        %419 = vmatpush.msra.mxu0 0.0
        %420 = vmatpush.msra.mxu0 0.0
        %421 = vmatpush.msra.mxu0 0.0
        %422 = vmatpush.msra.mxu0 %v352
        %423 = vmatmul.f32.gmra.mxu0 %v405
        %v424 = vpop.f32.mrf.mxu0
        %v425 = vadd.f32 0.0, %v424
        %426 = vdwg.mxu0
        %v427 = vadd.f32 %v400, %v425
        %428 = vset.pattern.permute.xlu0 1
        %429 = vperm.xlu0 %428, %v253
        %v430 = vpop.permute.xlu0 %429
        %v432 = vadd.f32 %v427, %v430
        %v433 = vadd.f32 %v432, %v248
        %v434 = vmax.f32 %v433, 0.0
        %435 = vst [vmem:[%s247] sm:$0xff] %v434
        %s436 = sand.u32 %s119, 1
        %s437 = scalar_lea.sflag [#allocation4], %s436
        %s438 = sand.u32 %s119, 1
        %s439 = smul.addr %s438, 8
        %s440 = scalar_lea.vmem [#allocation8], %s439
        // Predicated region
        $region49: #{tpu_custom_call.1} parent=35 // pred_check
          %p441 = pneg %p129
        $region50: #{tpu_custom_call.1} parent=35 // pred_check_branch
          %443 = sbr.rel (%p441) target = $region52
        $region51: #{tpu_custom_call.1} parent=35 // pred_region
          %445 = vsyncadd %s437, 0
          %s446 = smul.addr %s22, 8
          %s447 = scalar_lea.hbm %s4, %s446
          %s449 = sshll.u32 %s440, 4
          %s450 = int_to_ptr.vmem [resolvable:$true] %s449
          %s451 = sshll.u32 %s447, 4
          %s452 = int_to_ptr.hbm [resolvable:$true] %s451
          %454 = dma.vmem_to_hbm [thread:$0]  %s450, 128, %s452, %s437
        $region52: #{tpu_custom_call.1} parent=35 // pred_fallthru
          _
      $region36: #{tpu_custom_call.1} parent=5 // pred_fallthru
        _
      %p455 = scmp.le.s32.totalorder 2, %s17
      // Predicated region
      $region53: #{tpu_custom_call.1} parent=5 // pred_check
        %p456 = pneg %p455
      $region54: #{tpu_custom_call.1} parent=5 // pred_check_branch
        %458 = sbr.rel (%p456) target = $region56
      $region55: #{tpu_custom_call.1} parent=5 // pred_region
        %s459 = ssub.s32 %s17, 2
        // Predicated region
        $region57: #{tpu_custom_call.1} parent=55 // pred_check
          %p460 = pneg %p135
        $region58: #{tpu_custom_call.1} parent=55 // pred_check_branch
          %462 = sbr.rel (%p460) target = $region60
        $region59: #{tpu_custom_call.1} parent=55 // pred_region
          %s463 = sand.u32 %s120, 1
          %s464 = scalar_lea.sflag [#allocation4], %s463
          %s465 = sand.u32 %s120, 1
          %s466 = smul.addr %s465, 8
          %s467 = scalar_lea.vmem [#allocation8], %s466
          %469 = dma.done %s464, 128
        $region60: #{tpu_custom_call.1} parent=55 // pred_fallthru
          _
      $region56: #{tpu_custom_call.1} parent=5 // pred_fallthru
        _
    $region6: #{tpu_custom_call.1} parent=1 // loop_footer
      %s21 = sadd.s32 1, %s17
    $region7: #{tpu_custom_call.1} parent=1 // loop_footer_branch
      %16 = sbr.rel target = $region3
    $region8: #{tpu_custom_call.1} parent=1 // loop_exit
      _
    %470 = vsyncpa [#allocation3], 1
    %s471 = scalar_lea.sflag [#allocation3], 1
    %472 = vsyncpa %s471, 1
    %473 = vsyncpa [#allocation6], 1
    %474 = vsyncpa [#allocation4], 1
    %s475 = scalar_lea.sflag [#allocation4], 1
    %476 = vsyncpa %s475, 1

</llo_original>
